<compile_context>
chip_gen: v7x
topology: tpu7x:2x2x1
jax: 0.10.0
libtpu: 0.0.40
codegen_flags: <defaults>
</compile_context>

<pallas_src>
import math

import jax
import jax.numpy as jnp
from jax.experimental import pallas as pl
from jax.experimental.pallas import tpu as pltpu

_LANE = 128      # vreg lane width   (last dim granularity)
_SUBLANE = 8     # vreg sublane width (second-to-last dim granularity)
_MiB = 1024 * 1024


def _round_up(x, m):
    return (x + m - 1) // m * m


# ----------------------------------------------------------------------------
# Hardware / feature probing (robust fallbacks so the script always runs).
# ----------------------------------------------------------------------------
def _tpu_hw_info():
    """Returns (device_kind_lowercase, physical_vmem_bytes_per_core)."""
    kind = ""
    try:
        kind = jax.devices()[0].device_kind.lower()
    except Exception:
        pass
    vmem = None
    try:
        vmem = int(pltpu.get_tpu_info().vmem_capacity_bytes)
    except Exception:
        vmem = None
    if not vmem or vmem <= 0:
        # v5e / v6e: 128 MiB per TensorCore; v7x: 64 MiB. Be conservative
        # unless we can positively identify an older generation.
        vmem = 128 * _MiB if ("v5" in kind or "v6" in kind) else 64 * _MiB
    return kind, vmem


def _supports_pipeline_mode():
    """True if pl.BlockSpec(..., pipeline_mode=pl.Buffered(n)) is available."""
    if not hasattr(pl, "Buffered"):
        return False
    try:
        pl.BlockSpec((8, 128), lambda i: (i, 0), pipeline_mode=pl.Buffered(1))
        return True
    except Exception:
        return False


# ----------------------------------------------------------------------------
# One-time parameter preparation (hoisted out of the forward path).
# ----------------------------------------------------------------------------
def prepare_encoder_params(params, weight_dtype=jnp.bfloat16):
    """Pad weights/biases to lane-dense (128-multiple) feature dims and cast
    weights to bf16 once.  Zero padding keeps padded activation lanes exactly
    0 through matmul + bias + ReLU, so results on the real columns are exact.
    """
    dims = [params[0][0].shape[0]] + [w.shape[1] for w, _ in params]
    dims_pad = [_round_up(d, _LANE) for d in dims]
    layers = []
    for l, (w_t, b) in enumerate(params):
        kp, np_ = dims_pad[l], dims_pad[l + 1]
        w_p = (jnp.zeros((kp, np_), weight_dtype)
               .at[:dims[l], :dims[l + 1]].set(w_t.astype(weight_dtype)))
        b_p = (jnp.zeros((1, np_), jnp.float32)
               .at[0, :dims[l + 1]].set(b.astype(jnp.float32)))
        layers.append((w_p, b_p))
    return {"dims": dims, "dims_pad": dims_pad, "layers": layers}


# ----------------------------------------------------------------------------
# Tiling heuristics.
# ----------------------------------------------------------------------------
def _select_tm(m_pad8, dims_pad, kind):
    # v5e: 128-native MXU + single vst slot -> tm=128 bounds vreg pressure.
    # v6e/v7x: 256-native MXU, but drop to 128 when the widest layer would
    # blow past the 64-vreg file in the unrolled layer chain (h + y live).
    tm_target = 128 if "v5" in kind else 256
    if max(dims_pad) >= 512:
        tm_target = min(tm_target, 128)

    if m_pad8 <= tm_target:
        tm = m_pad8
        # v7x has 2 TensorCores: split the batch into >=2 parallel row tiles
        # when it is big enough so both cores get work.
        if "v7" in kind and m_pad8 >= 2 * _SUBLANE:
            tm = _round_up(m_pad8 // 2, _SUBLANE)
        return tm

    # Large batch: biggest tile whose M-padding waste stays <= 1/8 of the
    # work; otherwise minimize padded rows.
    cands = [c for c in (256, 128, 64, 32, 16, 8) if c <= tm_target]
    for c in cands:
        total = _round_up(m_pad8, c)
        if (total - m_pad8) * 8 <= total:
            return c
    return min(cands, key=lambda c: _round_up(m_pad8, c) - m_pad8)


def _fused_vmem_bytes(dims_pad, tm, layers, io_itemsize, x_bufs, w_bufs):
    w_bytes = sum(w.size * w.dtype.itemsize + b.size * b.dtype.itemsize
                  for w, b in layers) * w_bufs
    x_bytes = tm * dims_pad[0] * io_itemsize * x_bufs
    o_bytes = tm * dims_pad[-1] * io_itemsize * 2
    act_bytes = tm * max(dims_pad) * 4 * 2     # slack for live activations
    return w_bytes + x_bytes + o_bytes + act_bytes


# ----------------------------------------------------------------------------
# Fused whole-stack kernel (weights resident in VMEM).
# ----------------------------------------------------------------------------
def _make_fused_encoder_kernel(n_layers):
    def kernel(x_ref, *refs):
        o_ref = refs[-1]
        h = x_ref[...].astype(jnp.float32)
        for l in range(n_layers):                 # unrolled at trace time
            w_ref = refs[2 * l]                   # (K_pad, N_pad) bf16 resident
            b_ref = refs[2 * l + 1]               # (1, N_pad)    f32 resident
            y = jnp.dot(h.astype(w_ref.dtype), w_ref[...],
                        preferred_element_type=jnp.float32)   # MXU bf16, f32 acc
            y = y + b_ref[...]                    # VPU epilogue in f32
            h = jnp.maximum(y, 0.0)               # ReLU
        o_ref[...] = h.astype(o_ref.dtype)
    return kernel


def _fused_call(x_p, layers, dims_pad, tm, m_pad, vmem_limit,
                use_buffered, x_bufs):
    def spec(shape, imap, bufs):
        if use_buffered:
            return pl.BlockSpec(shape, imap, pipeline_mode=pl.Buffered(bufs))
        return pl.BlockSpec(shape, imap)

    in_specs = [spec((tm, dims_pad[0]), lambda i: (i, 0), x_bufs)]
    inputs = [x_p]
    for w_p, b_p in layers:
        kp, np_ = w_p.shape
        # Grid-invariant -> single-buffered, stays resident in VMEM.
        in_specs += [spec((kp, np_), lambda i: (0, 0), 1),
                     spec((1, np_), lambda i: (0, 0), 1)]
        inputs += [w_p, b_p]

    return pl.pallas_call(
        _make_fused_encoder_kernel(len(layers)),
        out_shape=jax.ShapeDtypeStruct((m_pad, dims_pad[-1]), x_p.dtype),
        grid_spec=pltpu.PrefetchScalarGridSpec(
            num_scalar_prefetch=0,
            grid=(m_pad // tm,),
            in_specs=in_specs,
            out_specs=pl.BlockSpec((tm, dims_pad[-1]), lambda i: (i, 0)),
        ),
        compiler_params=pltpu.CompilerParams(
            dimension_semantics=("parallel",),
            vmem_limit_bytes=int(vmem_limit),
        ),
    )(*inputs)


# ----------------------------------------------------------------------------
# Fallback: per-layer K-reduction-grid matmul + bias + ReLU (streams weight
# tiles instead of keeping the whole stack resident; used for large layers).
# ----------------------------------------------------------------------------
def _linear_relu_tiled(h, w_p, b_p, tm, vmem_phys):
    m_pad, k_pad = h.shape
    _, n_pad = w_p.shape
    tk = next(c for c in (512, 256, 128) if k_pad % c == 0)
    tn = next(c for c in (256, 128) if n_pad % c == 0)

    need = (2 * tm * tk * h.dtype.itemsize + 2 * tk * tn * w_p.dtype.itemsize
            + 2 * tn * 4 + 3 * tm * tn * 4)
    vmem_limit = int(min(vmem_phys - 8 * _MiB, max(32 * _MiB, need + 8 * _MiB)))

    def kernel(x_ref, w_ref, b_ref, o_ref, acc_ref):
        @pl.when(pl.program_id(2) == 0)
        def _():
            acc_ref[...] = jnp.zeros_like(acc_ref)

        acc_ref[...] += jnp.dot(x_ref[...].astype(w_ref.dtype), w_ref[...],
                                preferred_element_type=jnp.float32)

        @pl.when(pl.program_id(2) == pl.num_programs(2) - 1)
        def _():
            o_ref[...] = jnp.maximum(acc_ref[...] + b_ref[...],
                                     0.0).astype(o_ref.dtype)

    return pl.pallas_call(
        kernel,
        out_shape=jax.ShapeDtypeStruct((m_pad, n_pad), h.dtype),
        grid_spec=pltpu.PrefetchScalarGridSpec(
            num_scalar_prefetch=0,
            grid=(m_pad // tm, n_pad // tn, k_pad // tk),
            in_specs=[pl.BlockSpec((tm, tk), lambda i, j, k: (i, k)),
                      pl.BlockSpec((tk, tn), lambda i, j, k: (k, j)),
                      pl.BlockSpec((1, tn), lambda i, j, k: (0, j))],
            out_specs=pl.BlockSpec((tm, tn), lambda i, j, k: (i, j)),
            scratch_shapes=[pltpu.VMEM((tm, tn), jnp.float32)]),
        compiler_params=pltpu.CompilerParams(
            dimension_semantics=("parallel", "parallel", "arbitrary"),
            vmem_limit_bytes=vmem_limit),
    )(h, w_p, b_p)


# ----------------------------------------------------------------------------
# Forward.
# ----------------------------------------------------------------------------
def encoder_forward(prepped, x):
    """Fused [Linear -> ReLU]* forward.  `prepped` = prepare_encoder_params(...)."""
    dims, dims_pad, layers = prepped["dims"], prepped["dims_pad"], prepped["layers"]
    M, K = x.shape
    assert K == dims[0]

    kind, vmem_phys = _tpu_hw_info()

    # Row (M) tiling.
    m_pad8 = _round_up(max(M, _SUBLANE), _SUBLANE)
    tm = _select_tm(m_pad8, dims_pad, kind)
    m_pad = _round_up(m_pad8, tm)

    # Pipelining / buffering choices.
    use_buffered = _supports_pipeline_mode()
    w_bufs = 1 if use_buffered else 2
    # Thin (mem-bound) stacks: deepen the x pipeline to hide the per-step DMA.
    x_bufs = 3 if (use_buffered and max(dims_pad) <= 512) else 2

    # Pad x only if needed (skips an HBM round-trip copy when already aligned).
    if (m_pad != M) or (dims_pad[0] != K):
        x_p = jnp.zeros((m_pad, dims_pad[0]), x.dtype).at[:M, :K].set(x)
    else:
        x_p = x

    resident = _fused_vmem_bytes(dims_pad, tm, layers, x.dtype.itemsize,
                                 x_bufs, w_bufs)

    if resident <= int(0.6 * vmem_phys):
        # Fused path: whole stack in one pallas_call, weights VMEM-resident.
        vmem_limit = min(vmem_phys - 8 * _MiB, max(16 * _MiB, resident + 8 * _MiB))
        if use_buffered:
            try:
                out_p = _fused_call(x_p, layers, dims_pad, tm, m_pad,
                                    vmem_limit, True, x_bufs)
            except Exception:
                out_p = _fused_call(x_p, layers, dims_pad, tm, m_pad,
                                    vmem_limit, False, 2)
        else:
            out_p = _fused_call(x_p, layers, dims_pad, tm, m_pad,
                                vmem_limit, False, 2)
    else:
        # Large stack: stream each layer with a K-reduction grid axis so the
        # weights never need to be fully resident (v7x: 64 MiB VMEM).
        h = x_p
        for w_p, b_p in layers:
            h = _linear_relu_tiled(h, w_p, b_p, tm, vmem_phys)
        out_p = h

    return out_p[:M, :dims[-1]]


# ----------------------------------------------------------------------------
# Init + references.
# ----------------------------------------------------------------------------
def init_encoder_params(key, channels):
    """PyTorch-style init: U(-1/sqrt(fan_in), 1/sqrt(fan_in)); weight stored
    transposed as (in, out) so the kernel computes x @ w + b."""
    params = []
    for i in range(len(channels) - 1):
        fan_in, fan_out = channels[i], channels[i + 1]
        key, kw, kb = jax.random.split(key, 3)
        bound = 1.0 / math.sqrt(fan_in)
        w_t = jax.random.uniform(kw, (fan_in, fan_out), jnp.float32,
                                 minval=-bound, maxval=bound)
        b = jax.random.uniform(kb, (fan_out,), jnp.float32,
                               minval=-bound, maxval=bound)
        params.append((w_t, b))
    return params


def encoder_forward_ref(params, x):
    # Pure-f32 reference (PyTorch semantics).
    for w_t, b in params:
        x = jnp.maximum(x @ w_t + b, 0.0)
    return x


def encoder_forward_ref_bf16(params, x):
    # Reference mimicking the kernel's bf16-operand / f32-accumulate math.
    h = x.astype(jnp.float32)
    for w_t, b in params:
        wq = w_t.astype(jnp.bfloat16).astype(jnp.float32)
        hq = h.astype(jnp.bfloat16).astype(jnp.float32)
        h = jnp.maximum(hq @ wq + b, 0.0)
    return h


if __name__ == "__main__":
    # Small shapes consistent with the module: channels=(16, 32, 64), batch=8.
    channels = (16, 32, 64)
    batch = 8

    key = jax.random.PRNGKey(0)
    key, kx = jax.random.split(key)
    x = jax.random.normal(kx, (batch, channels[0]), jnp.float32)

    params = init_encoder_params(key, channels)
    prepped = prepare_encoder_params(params)   # one-time pad + bf16 cast

    out = encoder_forward(prepped, x)
    out = jax.block_until_ready(out)

    assert out.shape == (batch, channels[-1])
    # Tight check vs a reference that mimics the kernel's bf16/f32 arithmetic.
    qref = encoder_forward_ref_bf16(params, x)
    assert jnp.allclose(out, qref, atol=1e-3, rtol=1e-3)
    # Loose check vs the pure-f32 PyTorch-style reference (bf16 weight error).
    ref = encoder_forward_ref(params, x)
    assert jnp.allclose(out, ref, atol=5e-2, rtol=5e-2)

    print("KERNEL_OK")
</pallas_src>

<mosaic_0001>
module attributes {stable_mosaic.version = 11 : i64} {
  func.func @kernel(%arg0: i32, %arg1: memref<8x128xf32, #tpu.memory_space<vmem>>, %arg2: memref<128x128xbf16, #tpu.memory_space<vmem>>, %arg3: memref<1x128xf32, #tpu.memory_space<vmem>>, %arg4: memref<128x128xbf16, #tpu.memory_space<vmem>>, %arg5: memref<1x128xf32, #tpu.memory_space<vmem>>, %arg6: memref<8x128xf32, #tpu.memory_space<vmem>>) attributes {dimension_semantics = [#tpu.dimension_semantics<parallel>], iteration_bounds = array<i64: 1>, scalar_prefetch = 0 : i64, scratch_operands = 0 : i64, tpu.core_type = #tpu.core_type<tc>, window_params = [{transform_indices = @transform_0, window_bounds = array<i64: 8, 128>}, {pipeline_mode = #tpu.pipeline_mode<synchronous>, transform_indices = @transform_1, window_bounds = array<i64: 128, 128>}, {pipeline_mode = #tpu.pipeline_mode<synchronous>, transform_indices = @transform_2, window_bounds = array<i64: 1, 128>}, {pipeline_mode = #tpu.pipeline_mode<synchronous>, transform_indices = @transform_3, window_bounds = array<i64: 128, 128>}, {pipeline_mode = #tpu.pipeline_mode<synchronous>, transform_indices = @transform_4, window_bounds = array<i64: 1, 128>}, {transform_indices = @transform_5, window_bounds = array<i64: 8, 128>}]} {
    %c0 = arith.constant 0 : index
    %c0_0 = arith.constant 0 : index
    %0 = vector.load %arg1[%c0, %c0_0] : memref<8x128xf32, #tpu.memory_space<vmem>>, vector<8x128xf32>
    %1 = arith.truncf %0 : vector<8x128xf32> to vector<8x128xbf16>
    %c0_1 = arith.constant 0 : index
    %c0_2 = arith.constant 0 : index
    %2 = vector.load %arg2[%c0_1, %c0_2] : memref<128x128xbf16, #tpu.memory_space<vmem>>, vector<128x128xbf16>
    %cst = arith.constant dense<0.000000e+00> : vector<8x128xf32>
    %3 = tpu.matmul %1, %2, %cst {dimension_numbers = #tpu.dot_dimension_numbers<[1], [0], [0], [1], [0, 0, 1, 1], [], []>} : vector<8x128xbf16>, vector<128x128xbf16>, vector<8x128xf32> -> vector<8x128xf32>
    %c0_3 = arith.constant 0 : index
    %c0_4 = arith.constant 0 : index
    %4 = vector.load %arg3[%c0_3, %c0_4] : memref<1x128xf32, #tpu.memory_space<vmem>>, vector<1x128xf32>
    %5 = vector.broadcast %4 : vector<1x128xf32> to vector<8x128xf32>
    %6 = arith.addf %3, %5 : vector<8x128xf32>
    %cst_5 = arith.constant 0.000000e+00 : f32
    %7 = vector.broadcast %cst_5 : f32 to vector<8x128xf32>
    %8 = arith.maximumf %6, %7 : vector<8x128xf32>
    %9 = arith.truncf %8 : vector<8x128xf32> to vector<8x128xbf16>
    %c0_6 = arith.constant 0 : index
    %c0_7 = arith.constant 0 : index
    %10 = vector.load %arg4[%c0_6, %c0_7] : memref<128x128xbf16, #tpu.memory_space<vmem>>, vector<128x128xbf16>
    %cst_8 = arith.constant dense<0.000000e+00> : vector<8x128xf32>
    %11 = tpu.matmul %9, %10, %cst_8 {dimension_numbers = #tpu.dot_dimension_numbers<[1], [0], [0], [1], [0, 0, 1, 1], [], []>} : vector<8x128xbf16>, vector<128x128xbf16>, vector<8x128xf32> -> vector<8x128xf32>
    %c0_9 = arith.constant 0 : index
    %c0_10 = arith.constant 0 : index
    %12 = vector.load %arg5[%c0_9, %c0_10] : memref<1x128xf32, #tpu.memory_space<vmem>>, vector<1x128xf32>
    %13 = vector.broadcast %12 : vector<1x128xf32> to vector<8x128xf32>
    %14 = arith.addf %11, %13 : vector<8x128xf32>
    %cst_11 = arith.constant 0.000000e+00 : f32
    %15 = vector.broadcast %cst_11 : f32 to vector<8x128xf32>
    %16 = arith.maximumf %14, %15 : vector<8x128xf32>
    %c0_12 = arith.constant 0 : index
    %c0_13 = arith.constant 0 : index
    %17 = vector.load %arg6[%c0_12, %c0_13] : memref<8x128xf32, #tpu.memory_space<vmem>>, vector<8x128xf32>
    tpu.vector_store %arg6[%c0_12, %c0_13], %16 {strides = array<i32>} : memref<8x128xf32, #tpu.memory_space<vmem>>, vector<8x128xf32>,
    return
  }
  func.func @transform_0(%arg0: i32) -> (i32, i32) {
    %c0_i32 = arith.constant 0 : i32
    %c0_i32_0 = arith.constant 0 : i32
    return %arg0, %c0_i32 : i32, i32
  }
  func.func @transform_1(%arg0: i32) -> (i32, i32) {
    %c0_i32 = arith.constant 0 : i32
    %c0_i32_0 = arith.constant 0 : i32
    %c0_i32_1 = arith.constant 0 : i32
    return %c0_i32, %c0_i32_0 : i32, i32
  }
  func.func @transform_2(%arg0: i32) -> (i32, i32) {
    %c0_i32 = arith.constant 0 : i32
    %c0_i32_0 = arith.constant 0 : i32
    %c0_i32_1 = arith.constant 0 : i32
    return %c0_i32, %c0_i32_0 : i32, i32
  }
  func.func @transform_3(%arg0: i32) -> (i32, i32) {
    %c0_i32 = arith.constant 0 : i32
    %c0_i32_0 = arith.constant 0 : i32
    %c0_i32_1 = arith.constant 0 : i32
    return %c0_i32, %c0_i32_0 : i32, i32
  }
  func.func @transform_4(%arg0: i32) -> (i32, i32) {
    %c0_i32 = arith.constant 0 : i32
    %c0_i32_0 = arith.constant 0 : i32
    %c0_i32_1 = arith.constant 0 : i32
    return %c0_i32, %c0_i32_0 : i32, i32
  }
  func.func @transform_5(%arg0: i32) -> (i32, i32) {
    %c0_i32 = arith.constant 0 : i32
    %c0_i32_0 = arith.constant 0 : i32
    return %arg0, %c0_i32 : i32, i32
  }
}

</mosaic_0001>

<llo_original>
// kernel: tpu_custom_call.1
$region0: #{tpu_custom_call.1}
  #allocation0 [shape = 'u32[]', space=smem, size = 0x4, offset = 0x4, fixed_abs, tag = 'smem constant byte address 0x4 - core index']
  #allocation1 [shape = 'u32[144,128]{1,0:T(1,128)}', space=vmem, size = 0x12000, scoped, tag = 'internal scratch']
  %s0 = inlined_call_operand.hbm [shape: f32[8,128], index: 0, kind: input, shape index: {}]
  %s1 = inlined_call_operand.hbm [shape: bf16[128,128], index: 1, kind: input, shape index: {}]
  %s2 = inlined_call_operand.vmem [shape: f32[1,128], index: 2, kind: input, shape index: {}]
  %s3 = inlined_call_operand.hbm [shape: bf16[128,128], index: 3, kind: input, shape index: {}]
  %s4 = inlined_call_operand.vmem [shape: f32[1,128], index: 4, kind: input, shape index: {}]
  %s5 = inlined_call_operand.hbm [shape: f32[8,128], index: 5, kind: output, shape index: {}]
  %s6 = sld [smem:[#allocation0]]
  $region42: #{tpu_custom_call.1} parent=0
    _
  %s8 = ssub.s32 1, %s6
  %s9 = scalar_select 0, %s8, %s6
  $region1: #{tpu_custom_call.1} parent=0
    #allocation2 [shape = 'u8[4096]{0}', space=vmem, size = 0x1000, scoped, tag = 'input window, operand 0, single buffered']
    #allocation3 [shape = 's32[1]{0}', space=sflag, size = 0x4, scoped, tag = 'scoped memory for tpu_custom_call.1']
    #allocation4 [shape = 's32[1]{0}', space=sflag, size = 0x4, scoped, tag = 'scoped memory for tpu_custom_call.1']
    #allocation5 [shape = 'u8[32768]{0}', space=vmem, size = 0x8000, scoped, tag = 'input window, operand 1, single buffered']
    #allocation6 [shape = 's32[1]{0}', space=sflag, size = 0x4, scoped, tag = 'scoped memory for tpu_custom_call.1']
    #allocation7 [shape = 'u8[32768]{0}', space=vmem, size = 0x8000, scoped, tag = 'input window, operand 3, single buffered']
    #allocation8 [shape = 'u8[4096]{0}', space=vmem, size = 0x1000, scoped, tag = 'output window, operand 0, single buffered']
    %10 = vsyncpa [#allocation3], 0
    %11 = vsyncpa [#allocation6], 0
    %12 = vsyncpa [#allocation4], 0
    // Predicated region
    $region2: #{tpu_custom_call.1} parent=1 // pred_check
      _
    $region3: #{tpu_custom_call.1} parent=1 // pred_check_branch
      %14 = sbr.rel (0) target = $region5
    $region4: #{tpu_custom_call.1} parent=1 // pred_region
      %s16 = ssub.s32 128, 128
      %17 = vsyncadd [#allocation3], %s16
      %s19 = sshll.u32 [#allocation2], 4
      %s20 = int_to_ptr.vmem [resolvable:$true] %s19
      %22 = dma.hbm_to_vmem [thread:$0]  %s0, 128, %s20, [#allocation3]
    $region5: #{tpu_custom_call.1} parent=1 // pred_fallthru
      _
    // Predicated region
    $region6: #{tpu_custom_call.1} parent=1 // pred_check
      _
    $region7: #{tpu_custom_call.1} parent=1 // pred_check_branch
      %24 = sbr.rel (0) target = $region9
    $region8: #{tpu_custom_call.1} parent=1 // pred_region
      %s26 = ssub.s32 1024, 1024
      %27 = vsyncadd [#allocation6], %s26
      %s28 = sshll.u32 [#allocation5], 4
      %s29 = int_to_ptr.vmem [resolvable:$true] %s28
      %34 = dma.hbm_to_vmem [thread:$0]  %s1, 1024, %s29, [#allocation6], 64, 64, 4
    $region9: #{tpu_custom_call.1} parent=1 // pred_fallthru
      _
    // Predicated region
    $region10: #{tpu_custom_call.1} parent=1 // pred_check
      _
    $region11: #{tpu_custom_call.1} parent=1 // pred_check_branch
      %36 = sbr.rel (0) target = $region13
    $region12: #{tpu_custom_call.1} parent=1 // pred_region
      _
    $region13: #{tpu_custom_call.1} parent=1 // pred_fallthru
      _
    // Predicated region
    $region14: #{tpu_custom_call.1} parent=1 // pred_check
      _
    $region15: #{tpu_custom_call.1} parent=1 // pred_check_branch
      %38 = sbr.rel (0) target = $region17
    $region16: #{tpu_custom_call.1} parent=1 // pred_region
      %s40 = ssub.s32 1024, 1024
      %41 = vsyncadd [#allocation6], %s40
      %s42 = sshll.u32 [#allocation7], 4
      %s43 = int_to_ptr.vmem [resolvable:$true] %s42
      %48 = dma.hbm_to_vmem [thread:$0]  %s3, 1024, %s43, [#allocation6], 64, 64, 4
    $region17: #{tpu_custom_call.1} parent=1 // pred_fallthru
      _
    // Predicated region
    $region18: #{tpu_custom_call.1} parent=1 // pred_check
      _
    $region19: #{tpu_custom_call.1} parent=1 // pred_check_branch
      %50 = sbr.rel (0) target = $region21
    $region20: #{tpu_custom_call.1} parent=1 // pred_region
      _
    $region21: #{tpu_custom_call.1} parent=1 // pred_fallthru
      _
    // Predicated region
    $region22: #{tpu_custom_call.1} parent=1 // pred_check
      _
    $region23: #{tpu_custom_call.1} parent=1 // pred_check_branch
      %52 = sbr.rel (0) target = $region25
    $region24: #{tpu_custom_call.1} parent=1 // pred_region
      %53 = dma.done [#allocation3], 128
    $region25: #{tpu_custom_call.1} parent=1 // pred_fallthru
      _
    // Predicated region
    $region26: #{tpu_custom_call.1} parent=1 // pred_check
      _
    $region27: #{tpu_custom_call.1} parent=1 // pred_check_branch
      %55 = sbr.rel (0) target = $region29
    $region28: #{tpu_custom_call.1} parent=1 // pred_region
      %56 = dma.done [#allocation6], 1024
    $region29: #{tpu_custom_call.1} parent=1 // pred_fallthru
      _
    // Predicated region
    $region30: #{tpu_custom_call.1} parent=1 // pred_check
      _
    $region31: #{tpu_custom_call.1} parent=1 // pred_check_branch
      %58 = sbr.rel (0) target = $region33
    $region32: #{tpu_custom_call.1} parent=1 // pred_region
      %59 = dma.done [#allocation6], 1024
    $region33: #{tpu_custom_call.1} parent=1 // pred_fallthru
      _
    %v61 = vld [vmem:[#allocation2] sm:$0xff]
    %v62 = vpack.c.bf16 %v61, %v61
    %v63 = vld [vmem:[#allocation5] sm:$0xf]
    %v64 = vld [vmem:[#allocation5 + $0x4] sm:$0xf]
    %v65 = vld [vmem:[#allocation5 + $0x8] sm:$0xf]
    %v66 = vld [vmem:[#allocation5 + $0xc] sm:$0xf]
    %v67 = vld [vmem:[#allocation5 + $0x10] sm:$0xf]
    %v68 = vld [vmem:[#allocation5 + $0x14] sm:$0xf]
    %v69 = vld [vmem:[#allocation5 + $0x18] sm:$0xf]
    %v70 = vld [vmem:[#allocation5 + $0x1c] sm:$0xf]
    %v71 = vld [vmem:[#allocation5 + $0x20] sm:$0xf]
    %v72 = vld [vmem:[#allocation5 + $0x24] sm:$0xf]
    %v73 = vld [vmem:[#allocation5 + $0x28] sm:$0xf]
    %v74 = vld [vmem:[#allocation5 + $0x2c] sm:$0xf]
    %v75 = vld [vmem:[#allocation5 + $0x30] sm:$0xf]
    %v76 = vld [vmem:[#allocation5 + $0x34] sm:$0xf]
    %v77 = vld [vmem:[#allocation5 + $0x38] sm:$0xf]
    %v78 = vld [vmem:[#allocation5 + $0x3c] sm:$0xf]
    %v79 = vld [vmem:[%s2] sm:$0x1]
    %v81 = vlaneseq
    %v82 = vshrl.u32 %v81, 7
    %v83 = vsub.s32 0, %v82
    %v84 = vrot.slane %v79, %v83
    %v102 = vunpack.c.l.b16 %v63
    %v103 = vunpack.c.l.b16 %v64
    %v104 = vunpack.c.l.b16 %v65
    %v105 = vunpack.c.l.b16 %v66
    %v106 = vunpack.c.l.b16 %v67
    %v107 = vunpack.c.l.b16 %v68
    %v108 = vunpack.c.l.b16 %v69
    %v109 = vunpack.c.l.b16 %v70
    %v110 = vunpack.c.l.b16 %v71
    %v111 = vunpack.c.l.b16 %v72
    %v112 = vunpack.c.l.b16 %v73
    %v113 = vunpack.c.l.b16 %v74
    %v114 = vunpack.c.l.b16 %v75
    %v115 = vunpack.c.l.b16 %v76
    %v116 = vunpack.c.l.b16 %v77
    %v117 = vunpack.c.l.b16 %v78
    %v118 = vpack.c.b16 %v103, %v102
    %v119 = vpack.c.b16 %v105, %v104
    %v120 = vpack.c.b16 %v107, %v106
    %v121 = vpack.c.b16 %v109, %v108
    %v122 = vpack.c.b16 %v111, %v110
    %v123 = vpack.c.b16 %v113, %v112
    %v124 = vpack.c.b16 %v115, %v114
    %v125 = vpack.c.b16 %v117, %v116
    %134 = vmatprep.subr.bf16.mxu0 0
    %135 = vmatpush1.bf16.msra.mxu0 %v118
    %136 = vmatprep.subr.bf16.mxu0 0
    %137 = vmatpush1.bf16.msra.mxu0 %v119
    %138 = vmatprep.subr.bf16.mxu0 0
    %139 = vmatpush1.bf16.msra.mxu0 %v120
    %140 = vmatprep.subr.bf16.mxu0 0
    %141 = vmatpush1.bf16.msra.mxu0 %v121
    %142 = vmatprep.subr.bf16.mxu0 0
    %143 = vmatpush1.bf16.msra.mxu0 %v122
    %144 = vmatprep.subr.bf16.mxu0 0
    %145 = vmatpush1.bf16.msra.mxu0 %v123
    %146 = vmatprep.subr.bf16.mxu0 0
    %147 = vmatpush1.bf16.msra.mxu0 %v124
    %148 = vmatprep.subr.bf16.mxu0 0
    %149 = vmatpush1.bf16.msra.mxu0 %v125
    %150 = vmatprep.subr.bf16.mxu0 0
    %151 = vmatpush1.bf16.msra.mxu0 0
    %152 = vmatprep.subr.bf16.mxu0 0
    %153 = vmatpush1.bf16.msra.mxu0 0
    %154 = vmatprep.subr.bf16.mxu0 0
    %155 = vmatpush1.bf16.msra.mxu0 0
    %156 = vmatprep.subr.bf16.mxu0 0
    %157 = vmatpush1.bf16.msra.mxu0 0
    %158 = vmatprep.subr.bf16.mxu0 0
    %159 = vmatpush1.bf16.msra.mxu0 0
    %160 = vmatprep.subr.bf16.mxu0 0
    %161 = vmatpush1.bf16.msra.mxu0 0
    %162 = vmatprep.subr.bf16.mxu0 0
    %163 = vmatpush1.bf16.msra.mxu0 0
    %164 = vmatprep.subr.bf16.mxu0 0
    %165 = vmatpush1.bf16.msra.mxu0 0
    %166 = vmatprep.mubr.bf16.mxu0 0
    %167 = vmatmul.mubr.bf16.gmra.mrb[0].mxu0 %v62
    %v168 = vpop.f32.mrb[0].mxu0
    %v169 = vadd.f32 %v84, %v168
    %v170 = vpop.f32.mrb[0].mxu0
    %v171 = vpop.f32.mrb[0].mxu0
    %v172 = vpop.f32.mrb[0].mxu0
    %173 = vdwg.mxu0
    %v174 = vmax.f32 %v169, 0.0
    %v175 = vpack.c.bf16 %v174, %v174
    %v176 = vld [vmem:[#allocation7] sm:$0xf]
    %v177 = vld [vmem:[#allocation7 + $0x4] sm:$0xf]
    %v178 = vld [vmem:[#allocation7 + $0x8] sm:$0xf]
    %v179 = vld [vmem:[#allocation7 + $0xc] sm:$0xf]
    %v180 = vld [vmem:[#allocation7 + $0x10] sm:$0xf]
    %v181 = vld [vmem:[#allocation7 + $0x14] sm:$0xf]
    %v182 = vld [vmem:[#allocation7 + $0x18] sm:$0xf]
    %v183 = vld [vmem:[#allocation7 + $0x1c] sm:$0xf]
    %v184 = vld [vmem:[#allocation7 + $0x20] sm:$0xf]
    %v185 = vld [vmem:[#allocation7 + $0x24] sm:$0xf]
    %v186 = vld [vmem:[#allocation7 + $0x28] sm:$0xf]
    %v187 = vld [vmem:[#allocation7 + $0x2c] sm:$0xf]
    %v188 = vld [vmem:[#allocation7 + $0x30] sm:$0xf]
    %v189 = vld [vmem:[#allocation7 + $0x34] sm:$0xf]
    %v190 = vld [vmem:[#allocation7 + $0x38] sm:$0xf]
    %v191 = vld [vmem:[#allocation7 + $0x3c] sm:$0xf]
    %v192 = vld [vmem:[%s4] sm:$0x1]
    %v194 = vlaneseq
    %v195 = vshrl.u32 %v194, 7
    %v196 = vsub.s32 0, %v195
    %v197 = vrot.slane %v192, %v196
    %v215 = vunpack.c.l.b16 %v176
    %v216 = vunpack.c.l.b16 %v177
    %v217 = vunpack.c.l.b16 %v178
    %v218 = vunpack.c.l.b16 %v179
    %v219 = vunpack.c.l.b16 %v180
    %v220 = vunpack.c.l.b16 %v181
    %v221 = vunpack.c.l.b16 %v182
    %v222 = vunpack.c.l.b16 %v183
    %v223 = vunpack.c.l.b16 %v184
    %v224 = vunpack.c.l.b16 %v185
    %v225 = vunpack.c.l.b16 %v186
    %v226 = vunpack.c.l.b16 %v187
    %v227 = vunpack.c.l.b16 %v188
    %v228 = vunpack.c.l.b16 %v189
    %v229 = vunpack.c.l.b16 %v190
    %v230 = vunpack.c.l.b16 %v191
    %v231 = vpack.c.b16 %v216, %v215
    %v232 = vpack.c.b16 %v218, %v217
    %v233 = vpack.c.b16 %v220, %v219
    %v234 = vpack.c.b16 %v222, %v221
    %v235 = vpack.c.b16 %v224, %v223
    %v236 = vpack.c.b16 %v226, %v225
    %v237 = vpack.c.b16 %v228, %v227
    %v238 = vpack.c.b16 %v230, %v229
    %247 = vmatprep.subr.bf16.mxu0 0
    %248 = vmatpush1.bf16.msra.mxu0 %v231
    %249 = vmatprep.subr.bf16.mxu0 0
    %250 = vmatpush1.bf16.msra.mxu0 %v232
    %251 = vmatprep.subr.bf16.mxu0 0
    %252 = vmatpush1.bf16.msra.mxu0 %v233
    %253 = vmatprep.subr.bf16.mxu0 0
    %254 = vmatpush1.bf16.msra.mxu0 %v234
    %255 = vmatprep.subr.bf16.mxu0 0
    %256 = vmatpush1.bf16.msra.mxu0 %v235
    %257 = vmatprep.subr.bf16.mxu0 0
    %258 = vmatpush1.bf16.msra.mxu0 %v236
    %259 = vmatprep.subr.bf16.mxu0 0
    %260 = vmatpush1.bf16.msra.mxu0 %v237
    %261 = vmatprep.subr.bf16.mxu0 0
    %262 = vmatpush1.bf16.msra.mxu0 %v238
    %263 = vmatprep.subr.bf16.mxu0 0
    %264 = vmatpush1.bf16.msra.mxu0 0
    %265 = vmatprep.subr.bf16.mxu0 0
    %266 = vmatpush1.bf16.msra.mxu0 0
    %267 = vmatprep.subr.bf16.mxu0 0
    %268 = vmatpush1.bf16.msra.mxu0 0
    %269 = vmatprep.subr.bf16.mxu0 0
    %270 = vmatpush1.bf16.msra.mxu0 0
    %271 = vmatprep.subr.bf16.mxu0 0
    %272 = vmatpush1.bf16.msra.mxu0 0
    %273 = vmatprep.subr.bf16.mxu0 0
    %274 = vmatpush1.bf16.msra.mxu0 0
    %275 = vmatprep.subr.bf16.mxu0 0
    %276 = vmatpush1.bf16.msra.mxu0 0
    %277 = vmatprep.subr.bf16.mxu0 0
    %278 = vmatpush1.bf16.msra.mxu0 0
    %279 = vmatprep.mubr.bf16.mxu0 0
    %280 = vmatmul.mubr.bf16.gmra.mrb[0].mxu0 %v175
    %v281 = vpop.f32.mrb[0].mxu0
    %v282 = vadd.f32 %v197, %v281
    %v283 = vpop.f32.mrb[0].mxu0
    %v284 = vpop.f32.mrb[0].mxu0
    %v285 = vpop.f32.mrb[0].mxu0
    %286 = vdwg.mxu0
    %v287 = vmax.f32 %v282, 0.0
    %288 = vst [vmem:[#allocation8] sm:$0xff] %v287
    // Predicated region
    $region34: #{tpu_custom_call.1} parent=1 // pred_check
      _
    $region35: #{tpu_custom_call.1} parent=1 // pred_check_branch
      %290 = sbr.rel (0) target = $region37
    $region36: #{tpu_custom_call.1} parent=1 // pred_region
      %s292 = ssub.s32 128, 128
      %293 = vsyncadd [#allocation4], %s292
      %s295 = sshll.u32 [#allocation8], 4
      %s296 = int_to_ptr.vmem [resolvable:$true] %s295
      %298 = dma.vmem_to_hbm [thread:$0]  %s296, 128, %s5, [#allocation4]
    $region37: #{tpu_custom_call.1} parent=1 // pred_fallthru
      _
    // Predicated region
    $region38: #{tpu_custom_call.1} parent=1 // pred_check
      _
    $region39: #{tpu_custom_call.1} parent=1 // pred_check_branch
      %300 = sbr.rel (0) target = $region41
    $region40: #{tpu_custom_call.1} parent=1 // pred_region
      %301 = dma.done [#allocation4], 128
    $region41: #{tpu_custom_call.1} parent=1 // pred_fallthru
      _
    %302 = vsyncpa [#allocation3], 1
    %303 = vsyncpa [#allocation6], 1
    %304 = vsyncpa [#allocation4], 1

</llo_original>
